<compile_context>
chip_gen: v5e
topology: v5e:2x2
jax: 0.10.0
libtpu: 0.0.40
codegen_flags: <defaults>
</compile_context>

<pallas_src>
import jax
import jax.numpy as jnp
import numpy as np
from jax.experimental import pallas as pl
from jax.experimental.pallas import tpu as pltpu


def attn_decoder_kernel(
    toks_ref,                                   # SMEM [T] int32 (scalar prefetch)
    emb_tab_ref, hid0_ref, enc_ref,             # [O,H], [1,H], [L,H]
    attn_w_ref, comb_w_ref,                     # [2H,L], [2H,H]
    w_i_ref, w_h_ref, out_w_ref,                # [H,3H], [H,3H], [H,O]
    bias_ref,                                   # [5,128]  rows: attn,comb,b_i,b_h,out
    out_ref,                                    # [1,1,128] packed per-step output
    h_sc,                                       # VMEM scratch [1,H] (carried hidden)
):
    t = pl.program_id(0)
    H = hid0_ref.shape[1]
    L = enc_ref.shape[0]
    O = out_w_ref.shape[1]
    pack = out_ref.shape[-1]

    @pl.when(t == 0)
    def _():
        h_sc[...] = hid0_ref[...]

    hid = h_sc[...]                              # [1, H]

    # --- embedding lookup (in-kernel, via one-hot masked reduce) -------------
    tok = toks_ref[t]
    tab = emb_tab_ref[...]                       # [O, H]
    row_ids = jax.lax.broadcasted_iota(jnp.int32, tab.shape, 0)
    emb = jnp.sum(jnp.where(row_ids == tok, tab, 0.0), axis=0, keepdims=True)  # [1,H]

    # --- attention: softmax(cat(emb, hid) @ W_attn + b) ----------------------
    eh = jnp.concatenate([emb, hid], axis=1)     # [1, 2H]
    attn_b = bias_ref[0:1, 0:L]
    logits = jnp.dot(eh, attn_w_ref[...], preferred_element_type=jnp.float32) + attn_b
    m = jnp.max(logits, axis=1, keepdims=True)
    e = jnp.exp(logits - m)
    # exact reciprocal keeps bit-level agreement with the reference
    # (approx=True would move the divide to the EUP at ~1e-4 rel error).
    aw = e * pl.reciprocal(jnp.sum(e, axis=1, keepdims=True), approx=False)   # [1, L]

    attn_applied = jnp.dot(aw, enc_ref[...], preferred_element_type=jnp.float32)  # [1,H]

    # --- attn_combine + ReLU --------------------------------------------------
    ea = jnp.concatenate([emb, attn_applied], axis=1)                          # [1, 2H]
    comb_b = bias_ref[1:2, 0:H]
    x = jnp.maximum(
        jnp.dot(ea, comb_w_ref[...], preferred_element_type=jnp.float32) + comb_b, 0.0)

    # --- GRU cell (fused gate matmuls; PyTorch gate order r, z, n) -----------
    b_i = bias_ref[2:3, 0:3 * H]
    b_h = bias_ref[3:4, 0:3 * H]
    gi = jnp.dot(x, w_i_ref[...], preferred_element_type=jnp.float32) + b_i    # [1, 3H]
    gh = jnp.dot(hid, w_h_ref[...], preferred_element_type=jnp.float32) + b_h  # [1, 3H]
    r = jax.nn.sigmoid(gi[:, 0:H] + gh[:, 0:H])
    z = jax.nn.sigmoid(gi[:, H:2 * H] + gh[:, H:2 * H])
    n = jnp.tanh(gi[:, 2 * H:3 * H] + r * gh[:, 2 * H:3 * H])
    newh = (1.0 - z) * n + z * hid                                             # [1, H]
    h_sc[...] = newh

    # --- output projection + log_softmax -------------------------------------
    out_b = bias_ref[4:5, 0:O]
    o = jnp.dot(newh, out_w_ref[...], preferred_element_type=jnp.float32) + out_b
    mo = jnp.max(o, axis=1, keepdims=True)
    lse = jnp.log(jnp.sum(jnp.exp(o - mo), axis=1, keepdims=True)) + mo
    logp = o - lse                                                             # [1, O]

    # --- lane-dense packed store: [logp | newh | aw | zero pad] --------------
    used = O + H + L
    pieces = [logp, newh, aw]
    if pack > used:
        pieces.append(jnp.zeros((1, pack - used), jnp.float32))
    row = jnp.concatenate(pieces, axis=1)                                      # [1, pack]
    out_ref[...] = row.reshape(1, 1, pack)


def attn_decoder_forward(tokens, hidden, encoder_outputs, params):
    """tokens: [T] int32; hidden: [1,1,H]; encoder_outputs: [L,H].

    Returns (logp [T,O], newh [T,H], attn_weights [T,L]) — one row per decode
    step, identical to calling the PyTorch forward T times (teacher-forced).
    """
    T = tokens.shape[0]
    H = hidden.shape[-1]
    L = encoder_outputs.shape[0]
    O = params["out_W"].shape[1]
    PACK = 128
    assert O + H + L <= PACK, "packed output row must fit in 128 lanes"

    hid0 = hidden.reshape(1, H).astype(jnp.float32)

    def const_spec(shape):
        return pl.BlockSpec(shape, lambda t, toks, _s=shape: (0,) * len(_s))

    grid_spec = pltpu.PrefetchScalarGridSpec(
        num_scalar_prefetch=1,
        grid=(T,),
        in_specs=[
            const_spec(params["embedding"].shape),
            const_spec((1, H)),
            const_spec(encoder_outputs.shape),
            const_spec(params["attn_W"].shape),
            const_spec(params["comb_W"].shape),
            const_spec(params["W_i"].shape),
            const_spec(params["W_h"].shape),
            const_spec(params["out_W"].shape),
            const_spec(params["bias_pack"].shape),
        ],
        out_specs=pl.BlockSpec((1, 1, PACK), lambda t, toks: (t, 0, 0)),
        scratch_shapes=[pltpu.VMEM((1, H), jnp.float32)],
    )

    packed = pl.pallas_call(
        attn_decoder_kernel,
        out_shape=jax.ShapeDtypeStruct((T, 1, PACK), jnp.float32),
        grid_spec=grid_spec,
        compiler_params=pltpu.CompilerParams(dimension_semantics=("arbitrary",)),
    )(
        tokens.astype(jnp.int32),
        params["embedding"], hid0, encoder_outputs,
        params["attn_W"], params["comb_W"],
        params["W_i"], params["W_h"], params["out_W"],
        params["bias_pack"],
    )

    flat = packed[:, 0, :]
    logp = flat[:, :O]
    newh = flat[:, O:O + H]
    aw = flat[:, O + H:O + H + L]
    return logp, newh, aw


def reference_forward(tokens, hidden, encoder_outputs, params):
    """Pure-JAX reference: the PyTorch forward applied once per token."""
    H = hidden.shape[-1]
    L = encoder_outputs.shape[0]
    O = params["out_W"].shape[1]
    bias = params["bias_pack"]
    hid = hidden.reshape(1, H)
    logps, hids, aws = [], [], []
    for tok in np.asarray(tokens):
        emb = params["embedding"][int(tok)].reshape(1, H)
        eh = jnp.concatenate([emb, hid], axis=1)
        logits = eh @ params["attn_W"] + bias[0:1, :L]
        aw = jax.nn.softmax(logits, axis=1)
        attn_applied = aw @ encoder_outputs
        ea = jnp.concatenate([emb, attn_applied], axis=1)
        x = jax.nn.relu(ea @ params["comb_W"] + bias[1:2, :H])
        gi = x @ params["W_i"] + bias[2:3, :3 * H]
        gh = hid @ params["W_h"] + bias[3:4, :3 * H]
        r = jax.nn.sigmoid(gi[:, :H] + gh[:, :H])
        z = jax.nn.sigmoid(gi[:, H:2 * H] + gh[:, H:2 * H])
        n = jnp.tanh(gi[:, 2 * H:] + r * gh[:, 2 * H:])
        hid = (1.0 - z) * n + z * hid
        o = hid @ params["out_W"] + bias[4:5, :O]
        logps.append(jax.nn.log_softmax(o, axis=1))
        hids.append(hid)
        aws.append(aw)
    return (jnp.concatenate(logps, 0),
            jnp.concatenate(hids, 0),
            jnp.concatenate(aws, 0))


if __name__ == "__main__":
    H, O, L, T = 32, 16, 8, 4   # hidden_size, output_size(vocab), max_length, decode steps

    key = jax.random.PRNGKey(0)
    ks = list(jax.random.split(key, 20))

    def rnd(k, shape, scale=0.1):
        return jax.random.normal(k, shape, jnp.float32) * scale

    def pad_row(v, width=128):
        v = v.reshape(1, -1)
        return jnp.pad(v, ((0, 0), (0, width - v.shape[1])))

    # packed parameters (Linear weights stored as [in, out]; GRU gates r|z|n)
    attn_b = rnd(ks[3], (L,))
    comb_b = rnd(ks[6], (H,))
    b_i = rnd(ks[9], (3 * H,))
    b_h = rnd(ks[12], (3 * H,))
    out_b = rnd(ks[15], (O,))
    params = {
        "embedding": rnd(ks[0], (O, H)),
        "attn_W":    rnd(ks[1], (2 * H, L)),
        "comb_W":    rnd(ks[4], (2 * H, H)),
        "W_i":       rnd(ks[7], (H, 3 * H)),
        "W_h":       rnd(ks[10], (H, 3 * H)),
        "out_W":     rnd(ks[13], (H, O)),
        "bias_pack": jnp.concatenate(
            [pad_row(attn_b), pad_row(comb_b), pad_row(b_i), pad_row(b_h), pad_row(out_b)],
            axis=0),                                           # [5, 128]
    }

    tokens = jnp.array([3, 1, 7, 0], dtype=jnp.int32)[:T]
    hidden = rnd(ks[16], (1, 1, H))
    encoder_outputs = rnd(ks[17], (L, H))

    logp, newh, aw = attn_decoder_forward(tokens, hidden, encoder_outputs, params)
    jax.block_until_ready((logp, newh, aw))

    # correctness check vs pure-JAX reference (teacher-forced decode loop)
    logp_r, newh_r, aw_r = reference_forward(tokens, hidden, encoder_outputs, params)
    assert logp.shape == (T, O) and newh.shape == (T, H) and aw.shape == (T, L)
    np.testing.assert_allclose(np.asarray(logp), np.asarray(logp_r), rtol=1e-4, atol=1e-5)
    np.testing.assert_allclose(np.asarray(newh), np.asarray(newh_r), rtol=1e-4, atol=1e-5)
    np.testing.assert_allclose(np.asarray(aw),   np.asarray(aw_r),   rtol=1e-4, atol=1e-5)

    print("KERNEL_OK")
</pallas_src>

<mosaic_0001>
module attributes {stable_mosaic.version = 11 : i64} {
  func.func @attn_decoder_kernel(%arg0: i32, %arg1: memref<4xi32, #tpu.memory_space<smem>>, %arg2: memref<16x32xf32, #tpu.memory_space<vmem>>, %arg3: memref<1x32xf32, #tpu.memory_space<vmem>>, %arg4: memref<8x32xf32, #tpu.memory_space<vmem>>, %arg5: memref<64x8xf32, #tpu.memory_space<vmem>>, %arg6: memref<64x32xf32, #tpu.memory_space<vmem>>, %arg7: memref<32x96xf32, #tpu.memory_space<vmem>>, %arg8: memref<32x96xf32, #tpu.memory_space<vmem>>, %arg9: memref<32x16xf32, #tpu.memory_space<vmem>>, %arg10: memref<5x128xf32, #tpu.memory_space<vmem>>, %arg11: memref<1x1x128xf32, #tpu.memory_space<vmem>>, %arg12: memref<1x32xf32, #tpu.memory_space<vmem>>) attributes {dimension_semantics = [#tpu.dimension_semantics<arbitrary>], iteration_bounds = array<i64: 4>, scalar_prefetch = 1 : i64, scratch_operands = 1 : i64, tpu.core_type = #tpu.core_type<tc>, window_params = [{pipeline_mode = #tpu.pipeline_mode<synchronous>, transform_indices = @transform_0, window_bounds = array<i64: 16, 32>}, {pipeline_mode = #tpu.pipeline_mode<synchronous>, transform_indices = @transform_1, window_bounds = array<i64: 1, 32>}, {pipeline_mode = #tpu.pipeline_mode<synchronous>, transform_indices = @transform_2, window_bounds = array<i64: 8, 32>}, {pipeline_mode = #tpu.pipeline_mode<synchronous>, transform_indices = @transform_3, window_bounds = array<i64: 64, 8>}, {pipeline_mode = #tpu.pipeline_mode<synchronous>, transform_indices = @transform_4, window_bounds = array<i64: 64, 32>}, {pipeline_mode = #tpu.pipeline_mode<synchronous>, transform_indices = @transform_5, window_bounds = array<i64: 32, 96>}, {pipeline_mode = #tpu.pipeline_mode<synchronous>, transform_indices = @transform_6, window_bounds = array<i64: 32, 96>}, {pipeline_mode = #tpu.pipeline_mode<synchronous>, transform_indices = @transform_7, window_bounds = array<i64: 32, 16>}, {pipeline_mode = #tpu.pipeline_mode<synchronous>, transform_indices = @transform_8, window_bounds = array<i64: 5, 128>}, {transform_indices = @transform_9, window_bounds = array<i64: 1, 1, 128>}]} {
    %c0_i32 = arith.constant 0 : i32
    %0 = arith.cmpi eq, %arg0, %c0_i32 : i32
    %1 = arith.extui %0 : i1 to i32
    %c0_i32_0 = arith.constant 0 : i32
    %2 = arith.cmpi ne, %1, %c0_i32_0 : i32
    scf.if %2 {
      %c0_43 = arith.constant 0 : index
      %c0_44 = arith.constant 0 : index
      %92 = vector.load %arg3[%c0_43, %c0_44] : memref<1x32xf32, #tpu.memory_space<vmem>>, vector<1x32xf32>
      %c0_45 = arith.constant 0 : index
      %c0_46 = arith.constant 0 : index
      %93 = vector.load %arg12[%c0_45, %c0_46] : memref<1x32xf32, #tpu.memory_space<vmem>>, vector<1x32xf32>
      tpu.vector_store %arg12[%c0_45, %c0_46], %92 {strides = array<i32>} : memref<1x32xf32, #tpu.memory_space<vmem>>, vector<1x32xf32>,
    } else {
    }
    %c0 = arith.constant 0 : index
    %c0_1 = arith.constant 0 : index
    %3 = vector.load %arg12[%c0, %c0_1] : memref<1x32xf32, #tpu.memory_space<vmem>>, vector<1x32xf32>
    %4 = arith.index_cast %arg0 : i32 to index
    %5 = memref.load %arg1[%4] : memref<4xi32, #tpu.memory_space<smem>>
    %c0_2 = arith.constant 0 : index
    %c0_3 = arith.constant 0 : index
    %6 = vector.load %arg2[%c0_2, %c0_3] : memref<16x32xf32, #tpu.memory_space<vmem>>, vector<16x32xf32>
    %7 = tpu.iota {dimensions = array<i32: 0>} : vector<16x32xi32>
    %8 = vector.broadcast %5 : i32 to vector<16x32xi32>
    %9 = arith.cmpi eq, %7, %8 : vector<16x32xi32>
    %cst = arith.constant 0.000000e+00 : f32
    %10 = vector.broadcast %cst : f32 to vector<16x32xf32>
    %11 = arith.select %9, %6, %10 : vector<16x32xi1>, vector<16x32xf32>
    %cst_4 = arith.constant dense<0.000000e+00> : vector<32xf32>
    %12 = vector.multi_reduction <add>, %11, %cst_4 [0] : vector<16x32xf32> to vector<32xf32>
    %13 = vector.shape_cast %12 : vector<32xf32> to vector<1x32xf32>
    %14 = tpu.concatenate %13, %3 in 1 : vector<1x32xf32>, vector<1x32xf32> -> vector<1x64xf32>
    %c0_5 = arith.constant 0 : index
    %c0_6 = arith.constant 0 : index
    %15 = vector.load %arg10[%c0_5, %c0_6] : memref<5x128xf32, #tpu.memory_space<vmem>>, vector<1x8xf32>
    %c0_7 = arith.constant 0 : index
    %c0_8 = arith.constant 0 : index
    %16 = vector.load %arg5[%c0_7, %c0_8] : memref<64x8xf32, #tpu.memory_space<vmem>>, vector<64x8xf32>
    %cst_9 = arith.constant dense<0.000000e+00> : vector<1x8xf32>
    %17 = tpu.matmul %14, %16, %cst_9 {dimension_numbers = #tpu.dot_dimension_numbers<[1], [0], [0], [1], [0, 0, 1, 1], [], []>} : vector<1x64xf32>, vector<64x8xf32>, vector<1x8xf32> -> vector<1x8xf32>
    %18 = arith.addf %17, %15 : vector<1x8xf32>
    %cst_10 = arith.constant dense<0xFF800000> : vector<1xf32>
    %19 = vector.multi_reduction <maximumf>, %18, %cst_10 [1] : vector<1x8xf32> to vector<1xf32>
    %20 = vector.shape_cast %19 : vector<1xf32> to vector<1x1xf32>
    %21 = vector.broadcast %20 : vector<1x1xf32> to vector<1x8xf32>
    %22 = arith.subf %18, %21 : vector<1x8xf32>
    %23 = math.exp %22 : vector<1x8xf32>
    %cst_11 = arith.constant dense<0.000000e+00> : vector<1xf32>
    %24 = vector.multi_reduction <add>, %23, %cst_11 [1] : vector<1x8xf32> to vector<1xf32>
    %25 = vector.shape_cast %24 : vector<1xf32> to vector<1x1xf32>
    %26 = tpu.reciprocal %25 : vector<1x1xf32> -> vector<1x1xf32>
    %27 = vector.broadcast %26 : vector<1x1xf32> to vector<1x8xf32>
    %28 = arith.mulf %23, %27 : vector<1x8xf32>
    %c0_12 = arith.constant 0 : index
    %c0_13 = arith.constant 0 : index
    %29 = vector.load %arg4[%c0_12, %c0_13] : memref<8x32xf32, #tpu.memory_space<vmem>>, vector<8x32xf32>
    %cst_14 = arith.constant dense<0.000000e+00> : vector<1x32xf32>
    %30 = tpu.matmul %28, %29, %cst_14 {dimension_numbers = #tpu.dot_dimension_numbers<[1], [0], [0], [1], [0, 0, 1, 1], [], []>} : vector<1x8xf32>, vector<8x32xf32>, vector<1x32xf32> -> vector<1x32xf32>
    %31 = tpu.concatenate %13, %30 in 1 : vector<1x32xf32>, vector<1x32xf32> -> vector<1x64xf32>
    %c1 = arith.constant 1 : index
    %c0_15 = arith.constant 0 : index
    %32 = vector.load %arg10[%c1, %c0_15] : memref<5x128xf32, #tpu.memory_space<vmem>>, vector<1x32xf32>
    %c0_16 = arith.constant 0 : index
    %c0_17 = arith.constant 0 : index
    %33 = vector.load %arg6[%c0_16, %c0_17] : memref<64x32xf32, #tpu.memory_space<vmem>>, vector<64x32xf32>
    %cst_18 = arith.constant dense<0.000000e+00> : vector<1x32xf32>
    %34 = tpu.matmul %31, %33, %cst_18 {dimension_numbers = #tpu.dot_dimension_numbers<[1], [0], [0], [1], [0, 0, 1, 1], [], []>} : vector<1x64xf32>, vector<64x32xf32>, vector<1x32xf32> -> vector<1x32xf32>
    %35 = arith.addf %34, %32 : vector<1x32xf32>
    %cst_19 = arith.constant 0.000000e+00 : f32
    %36 = vector.broadcast %cst_19 : f32 to vector<1x32xf32>
    %37 = arith.maximumf %35, %36 : vector<1x32xf32>
    %c2 = arith.constant 2 : index
    %c0_20 = arith.constant 0 : index
    %38 = vector.load %arg10[%c2, %c0_20] : memref<5x128xf32, #tpu.memory_space<vmem>>, vector<1x96xf32>
    %c3 = arith.constant 3 : index
    %c0_21 = arith.constant 0 : index
    %39 = vector.load %arg10[%c3, %c0_21] : memref<5x128xf32, #tpu.memory_space<vmem>>, vector<1x96xf32>
    %c0_22 = arith.constant 0 : index
    %c0_23 = arith.constant 0 : index
    %40 = vector.load %arg7[%c0_22, %c0_23] : memref<32x96xf32, #tpu.memory_space<vmem>>, vector<32x96xf32>
    %cst_24 = arith.constant dense<0.000000e+00> : vector<1x96xf32>
    %41 = tpu.matmul %37, %40, %cst_24 {dimension_numbers = #tpu.dot_dimension_numbers<[1], [0], [0], [1], [0, 0, 1, 1], [], []>} : vector<1x32xf32>, vector<32x96xf32>, vector<1x96xf32> -> vector<1x96xf32>
    %42 = arith.addf %41, %38 : vector<1x96xf32>
    %c0_25 = arith.constant 0 : index
    %c0_26 = arith.constant 0 : index
    %43 = vector.load %arg8[%c0_25, %c0_26] : memref<32x96xf32, #tpu.memory_space<vmem>>, vector<32x96xf32>
    %cst_27 = arith.constant dense<0.000000e+00> : vector<1x96xf32>
    %44 = tpu.matmul %3, %43, %cst_27 {dimension_numbers = #tpu.dot_dimension_numbers<[1], [0], [0], [1], [0, 0, 1, 1], [], []>} : vector<1x32xf32>, vector<32x96xf32>, vector<1x96xf32> -> vector<1x96xf32>
    %45 = arith.addf %44, %39 : vector<1x96xf32>
    %46 = vector.extract_strided_slice %42 {offsets = [0, 0], sizes = [1, 32], strides = [1, 1]} : vector<1x96xf32> to vector<1x32xf32>
    %47 = vector.extract_strided_slice %45 {offsets = [0, 0], sizes = [1, 32], strides = [1, 1]} : vector<1x96xf32> to vector<1x32xf32>
    %48 = arith.addf %46, %47 : vector<1x32xf32>
    %49 = arith.negf %48 : vector<1x32xf32>
    %50 = math.exp %49 : vector<1x32xf32>
    %cst_28 = arith.constant 1.000000e+00 : f32
    %51 = vector.broadcast %cst_28 : f32 to vector<1x32xf32>
    %52 = arith.addf %51, %50 : vector<1x32xf32>
    %53 = arith.divf %51, %52 : vector<1x32xf32>
    %54 = vector.extract_strided_slice %42 {offsets = [0, 32], sizes = [1, 32], strides = [1, 1]} : vector<1x96xf32> to vector<1x32xf32>
    %55 = vector.extract_strided_slice %45 {offsets = [0, 32], sizes = [1, 32], strides = [1, 1]} : vector<1x96xf32> to vector<1x32xf32>
    %56 = arith.addf %54, %55 : vector<1x32xf32>
    %57 = arith.negf %56 : vector<1x32xf32>
    %58 = math.exp %57 : vector<1x32xf32>
    %cst_29 = arith.constant 1.000000e+00 : f32
    %59 = vector.broadcast %cst_29 : f32 to vector<1x32xf32>
    %60 = arith.addf %59, %58 : vector<1x32xf32>
    %61 = arith.divf %59, %60 : vector<1x32xf32>
    %62 = vector.extract_strided_slice %42 {offsets = [0, 64], sizes = [1, 32], strides = [1, 1]} : vector<1x96xf32> to vector<1x32xf32>
    %63 = vector.extract_strided_slice %45 {offsets = [0, 64], sizes = [1, 32], strides = [1, 1]} : vector<1x96xf32> to vector<1x32xf32>
    %64 = arith.mulf %53, %63 : vector<1x32xf32>
    %65 = arith.addf %62, %64 : vector<1x32xf32>
    %66 = math.tanh %65 : vector<1x32xf32>
    %cst_30 = arith.constant 1.000000e+00 : f32
    %67 = vector.broadcast %cst_30 : f32 to vector<1x32xf32>
    %68 = arith.subf %67, %61 : vector<1x32xf32>
    %69 = arith.mulf %68, %66 : vector<1x32xf32>
    %70 = arith.mulf %61, %3 : vector<1x32xf32>
    %71 = arith.addf %69, %70 : vector<1x32xf32>
    %c0_31 = arith.constant 0 : index
    %c0_32 = arith.constant 0 : index
    %72 = vector.load %arg12[%c0_31, %c0_32] : memref<1x32xf32, #tpu.memory_space<vmem>>, vector<1x32xf32>
    tpu.vector_store %arg12[%c0_31, %c0_32], %71 {strides = array<i32>} : memref<1x32xf32, #tpu.memory_space<vmem>>, vector<1x32xf32>,
    %c4 = arith.constant 4 : index
    %c0_33 = arith.constant 0 : index
    %73 = vector.load %arg10[%c4, %c0_33] : memref<5x128xf32, #tpu.memory_space<vmem>>, vector<1x16xf32>
    %c0_34 = arith.constant 0 : index
    %c0_35 = arith.constant 0 : index
    %74 = vector.load %arg9[%c0_34, %c0_35] : memref<32x16xf32, #tpu.memory_space<vmem>>, vector<32x16xf32>
    %cst_36 = arith.constant dense<0.000000e+00> : vector<1x16xf32>
    %75 = tpu.matmul %71, %74, %cst_36 {dimension_numbers = #tpu.dot_dimension_numbers<[1], [0], [0], [1], [0, 0, 1, 1], [], []>} : vector<1x32xf32>, vector<32x16xf32>, vector<1x16xf32> -> vector<1x16xf32>
    %76 = arith.addf %75, %73 : vector<1x16xf32>
    %cst_37 = arith.constant dense<0xFF800000> : vector<1xf32>
    %77 = vector.multi_reduction <maximumf>, %76, %cst_37 [1] : vector<1x16xf32> to vector<1xf32>
    %78 = vector.shape_cast %77 : vector<1xf32> to vector<1x1xf32>
    %79 = vector.broadcast %78 : vector<1x1xf32> to vector<1x16xf32>
    %80 = arith.subf %76, %79 : vector<1x16xf32>
    %81 = math.exp %80 : vector<1x16xf32>
    %cst_38 = arith.constant dense<0.000000e+00> : vector<1xf32>
    %82 = vector.multi_reduction <add>, %81, %cst_38 [1] : vector<1x16xf32> to vector<1xf32>
    %83 = vector.shape_cast %82 : vector<1xf32> to vector<1x1xf32>
    %84 = math.log %83 : vector<1x1xf32>
    %85 = arith.addf %84, %78 : vector<1x1xf32>
    %86 = vector.broadcast %85 : vector<1x1xf32> to vector<1x16xf32>
    %87 = arith.subf %76, %86 : vector<1x16xf32>
    %cst_39 = arith.constant 0.000000e+00 : f32
    %88 = vector.broadcast %cst_39 : f32 to vector<1x72xf32>
    %89 = tpu.concatenate %87, %71, %28, %88 in 1 : vector<1x16xf32>, vector<1x32xf32>, vector<1x8xf32>, vector<1x72xf32> -> vector<1x128xf32>
    %90 = vector.shape_cast %89 : vector<1x128xf32> to vector<1x1x128xf32>
    %c0_40 = arith.constant 0 : index
    %c0_41 = arith.constant 0 : index
    %c0_42 = arith.constant 0 : index
    %91 = vector.load %arg11[%c0_40, %c0_41, %c0_42] : memref<1x1x128xf32, #tpu.memory_space<vmem>>, vector<1x1x128xf32>
    tpu.vector_store %arg11[%c0_40, %c0_41, %c0_42], %90 {strides = array<i32>} : memref<1x1x128xf32, #tpu.memory_space<vmem>>, vector<1x1x128xf32>,
    return
  }
  func.func @transform_0(%arg0: i32, %arg1: memref<4xi32, #tpu.memory_space<smem>>) -> (i32, i32) {
    %c0_i32 = arith.constant 0 : i32
    %c0_i32_0 = arith.constant 0 : i32
    %c0_i32_1 = arith.constant 0 : i32
    return %c0_i32, %c0_i32_0 : i32, i32
  }
  func.func @transform_1(%arg0: i32, %arg1: memref<4xi32, #tpu.memory_space<smem>>) -> (i32, i32) {
    %c0_i32 = arith.constant 0 : i32
    %c0_i32_0 = arith.constant 0 : i32
    %c0_i32_1 = arith.constant 0 : i32
    return %c0_i32, %c0_i32_0 : i32, i32
  }
  func.func @transform_2(%arg0: i32, %arg1: memref<4xi32, #tpu.memory_space<smem>>) -> (i32, i32) {
    %c0_i32 = arith.constant 0 : i32
    %c0_i32_0 = arith.constant 0 : i32
    %c0_i32_1 = arith.constant 0 : i32
    return %c0_i32, %c0_i32_0 : i32, i32
  }
  func.func @transform_3(%arg0: i32, %arg1: memref<4xi32, #tpu.memory_space<smem>>) -> (i32, i32) {
    %c0_i32 = arith.constant 0 : i32
    %c0_i32_0 = arith.constant 0 : i32
    %c0_i32_1 = arith.constant 0 : i32
    return %c0_i32, %c0_i32_0 : i32, i32
  }
  func.func @transform_4(%arg0: i32, %arg1: memref<4xi32, #tpu.memory_space<smem>>) -> (i32, i32) {
    %c0_i32 = arith.constant 0 : i32
    %c0_i32_0 = arith.constant 0 : i32
    %c0_i32_1 = arith.constant 0 : i32
    return %c0_i32, %c0_i32_0 : i32, i32
  }
  func.func @transform_5(%arg0: i32, %arg1: memref<4xi32, #tpu.memory_space<smem>>) -> (i32, i32) {
    %c0_i32 = arith.constant 0 : i32
    %c0_i32_0 = arith.constant 0 : i32
    %c0_i32_1 = arith.constant 0 : i32
    return %c0_i32, %c0_i32_0 : i32, i32
  }
  func.func @transform_6(%arg0: i32, %arg1: memref<4xi32, #tpu.memory_space<smem>>) -> (i32, i32) {
    %c0_i32 = arith.constant 0 : i32
    %c0_i32_0 = arith.constant 0 : i32
    %c0_i32_1 = arith.constant 0 : i32
    return %c0_i32, %c0_i32_0 : i32, i32
  }
  func.func @transform_7(%arg0: i32, %arg1: memref<4xi32, #tpu.memory_space<smem>>) -> (i32, i32) {
    %c0_i32 = arith.constant 0 : i32
    %c0_i32_0 = arith.constant 0 : i32
    %c0_i32_1 = arith.constant 0 : i32
    return %c0_i32, %c0_i32_0 : i32, i32
  }
  func.func @transform_8(%arg0: i32, %arg1: memref<4xi32, #tpu.memory_space<smem>>) -> (i32, i32) {
    %c0_i32 = arith.constant 0 : i32
    %c0_i32_0 = arith.constant 0 : i32
    %c0_i32_1 = arith.constant 0 : i32
    return %c0_i32, %c0_i32_0 : i32, i32
  }
  func.func @transform_9(%arg0: i32, %arg1: memref<4xi32, #tpu.memory_space<smem>>) -> (i32, i32, i32) {
    %c0_i32 = arith.constant 0 : i32
    %c0_i32_0 = arith.constant 0 : i32
    %c0_i32_1 = arith.constant 0 : i32
    return %arg0, %c0_i32, %c0_i32_0 : i32, i32, i32
  }
}

</mosaic_0001>

<llo_original>
// kernel: tpu_custom_call.1
$region0: #{tpu_custom_call.1}
  #allocation0 [shape = 'u32[]', space=smem, size = 0x4, offset = 0x4, fixed_abs, tag = 'smem constant byte address 0x4 - core index']
  #allocation1 [shape = 'u32[72,128]{1,0:T(1,128)}', space=vmem, size = 0x9000, scoped, tag = 'internal scratch']
  #allocation2 [shape = 'f32[1,32]{1,0:T(1,128)}', space=vmem, size = 0x200, scoped, tag = 'scratch operand']
  #allocation3 [shape = 's32[1]{0}', space=sflag, size = 0x4, scoped, tag = 'scoped memory for tpu_custom_call.1']
  #allocation4 [shape = 'u8[512]{0}', space=smem, size = 0x200, scoped, tag = 'prefetched SMEM operand 0']
  %s0 = inlined_call_operand.vmem [shape: s32[4], index: 0, kind: input, shape index: {}]
  %s1 = inlined_call_operand.vmem [shape: f32[16,32], index: 1, kind: input, shape index: {}]
  %s2 = inlined_call_operand.vmem [shape: f32[1,32], index: 2, kind: input, shape index: {}]
  %s3 = inlined_call_operand.vmem [shape: f32[8,32], index: 3, kind: input, shape index: {}]
  %s4 = inlined_call_operand.vmem [shape: f32[64,8], index: 4, kind: input, shape index: {}]
  %s5 = inlined_call_operand.vmem [shape: f32[64,32], index: 5, kind: input, shape index: {}]
  %s6 = inlined_call_operand.vmem [shape: f32[32,96], index: 6, kind: input, shape index: {}]
  %s7 = inlined_call_operand.vmem [shape: f32[32,96], index: 7, kind: input, shape index: {}]
  %s8 = inlined_call_operand.vmem [shape: f32[32,16], index: 8, kind: input, shape index: {}]
  %s9 = inlined_call_operand.vmem [shape: f32[5,128], index: 9, kind: input, shape index: {}]
  %s10 = inlined_call_operand.hbm [shape: f32[4,1,128], index: 10, kind: output, shape index: {}]
  %s11 = sld [smem:[#allocation0]]
  $region73: #{tpu_custom_call.1} parent=0
    _
  %s13 = ssub.s32 1, %s11
  %s14 = scalar_select 0, %s13, %s11
  %s16 = sshll.u32 %s0, 4
  %s17 = int_to_ptr.vmem [resolvable:$true] %s16
  %19 = dma.vmem_to_smem %s17, 16, [#allocation4], [#allocation3]
  %21 = dma.done [#allocation3], 16
  %22 = sfence
  $region1: #{tpu_custom_call.1} parent=0
    #allocation5 [shape = 'u8[1024]{0}', space=vmem, size = 0x400, scoped, tag = 'output window, operand 0']
    #allocation6 [shape = 's32[2]{0}', space=sflag, size = 0x8, scoped, tag = 'scoped memory for tpu_custom_call.1']
    %23 = vsyncpa [#allocation6], 0
    %s24 = scalar_lea.sflag [#allocation6], 1
    %25 = vsyncpa %s24, 0
    loop: start=0, step=1, limit=6
    $region2: #{tpu_custom_call.1} parent=1 // loop_pre_header
      _
    $region3: #{tpu_custom_call.1} parent=1 // loop_header
      %s27 = sphi 0, %s31
      %p28 = scmp.ge.s32.totalorder %s27, 6
      %s35 = sphi 0, %s35
      %s37 = sphi 0, %s35
      %s38 = sphi 0, %s37
      %s52 = sphi 0, %s38
      %s56 = sphi 0, %s56
      %s58 = sphi 0, %s56
      %s59 = sphi 0, %s58
      %s73 = sphi 0, %s59
      %s77 = sphi 0, %s77
      %s79 = sphi 0, %s77
      %s80 = sphi 0, %s79
      %s94 = sphi 0, %s80
      %s98 = sphi 0, %s98
      %s100 = sphi 0, %s98
      %s101 = sphi 0, %s100
      %s115 = sphi 0, %s101
      %s119 = sphi 0, %s119
      %s121 = sphi 0, %s119
      %s122 = sphi 0, %s121
      %s136 = sphi 0, %s122
      %s140 = sphi 0, %s140
      %s142 = sphi 0, %s140
      %s143 = sphi 0, %s142
      %s157 = sphi 0, %s143
      %s161 = sphi 0, %s161
      %s163 = sphi 0, %s161
      %s164 = sphi 0, %s163
      %s178 = sphi 0, %s164
      %s182 = sphi 0, %s182
      %s184 = sphi 0, %s182
      %s185 = sphi 0, %s184
      %s199 = sphi 0, %s185
      %s203 = sphi 0, %s203
      %s205 = sphi 0, %s203
      %s206 = sphi 0, %s205
      %s220 = sphi 0, %s206
      %s226 = sphi 0, %s228
      %s229 = sphi 0, %s226
      %s230 = sphi 0, %s229
      %s246 = sphi 0, %s230
    $region4: #{tpu_custom_call.1} parent=1 // loop_header_branch
      %30 = sbr.rel (%p28) target = $region8
    $region5: #{tpu_custom_call.1} parent=1 // loop_body
      %s32 = ssub.s32 %s27, 1
      %s33 = ssub.s32 %s27, 2
      %s34 = sadd.s32 %s27, 1
      %s36 = sadd.s32 %s35, 1
      %p39 = scmp.eq.s32.totalorder %s27, 3
      %p40 = scmp.ne.s32.totalorder %s35, %s37
      %p41 = scmp.eq.s32.totalorder %s27, 0
      %p42 = por %p40, %p41
      %p43 = scmp.ne.s32.totalorder %s35, %s37
      %p44 = scmp.eq.s32.totalorder %s32, 3
      %p45 = por %p43, %p44
      %p46 = scmp.ne.s32.totalorder %s37, %s38
      %p47 = scmp.eq.s32.totalorder %s32, 0
      %p48 = por %p46, %p47
      %p49 = scmp.ne.s32.totalorder %s37, %s38
      %p50 = scmp.eq.s32.totalorder %s33, 3
      %p51 = por %p49, %p50
      %p53 = scmp.ne.s32.totalorder %s38, %s52
      %p54 = scmp.eq.s32.totalorder %s33, 0
      %p55 = por %p53, %p54
      %s57 = sadd.s32 %s56, 1
      %p60 = scmp.eq.s32.totalorder %s27, 3
      %p61 = scmp.ne.s32.totalorder %s56, %s58
      %p62 = scmp.eq.s32.totalorder %s27, 0
      %p63 = por %p61, %p62
      %p64 = scmp.ne.s32.totalorder %s56, %s58
      %p65 = scmp.eq.s32.totalorder %s32, 3
      %p66 = por %p64, %p65
      %p67 = scmp.ne.s32.totalorder %s58, %s59
      %p68 = scmp.eq.s32.totalorder %s32, 0
      %p69 = por %p67, %p68
      %p70 = scmp.ne.s32.totalorder %s58, %s59
      %p71 = scmp.eq.s32.totalorder %s33, 3
      %p72 = por %p70, %p71
      %p74 = scmp.ne.s32.totalorder %s59, %s73
      %p75 = scmp.eq.s32.totalorder %s33, 0
      %p76 = por %p74, %p75
      %s78 = sadd.s32 %s77, 1
      %p81 = scmp.eq.s32.totalorder %s27, 3
      %p82 = scmp.ne.s32.totalorder %s77, %s79
      %p83 = scmp.eq.s32.totalorder %s27, 0
      %p84 = por %p82, %p83
      %p85 = scmp.ne.s32.totalorder %s77, %s79
      %p86 = scmp.eq.s32.totalorder %s32, 3
      %p87 = por %p85, %p86
      %p88 = scmp.ne.s32.totalorder %s79, %s80
      %p89 = scmp.eq.s32.totalorder %s32, 0
      %p90 = por %p88, %p89
      %p91 = scmp.ne.s32.totalorder %s79, %s80
      %p92 = scmp.eq.s32.totalorder %s33, 3
      %p93 = por %p91, %p92
      %p95 = scmp.ne.s32.totalorder %s80, %s94
      %p96 = scmp.eq.s32.totalorder %s33, 0
      %p97 = por %p95, %p96
      %s99 = sadd.s32 %s98, 1
      %p102 = scmp.eq.s32.totalorder %s27, 3
      %p103 = scmp.ne.s32.totalorder %s98, %s100
      %p104 = scmp.eq.s32.totalorder %s27, 0
      %p105 = por %p103, %p104
      %p106 = scmp.ne.s32.totalorder %s98, %s100
      %p107 = scmp.eq.s32.totalorder %s32, 3
      %p108 = por %p106, %p107
      %p109 = scmp.ne.s32.totalorder %s100, %s101
      %p110 = scmp.eq.s32.totalorder %s32, 0
      %p111 = por %p109, %p110
      %p112 = scmp.ne.s32.totalorder %s100, %s101
      %p113 = scmp.eq.s32.totalorder %s33, 3
      %p114 = por %p112, %p113
      %p116 = scmp.ne.s32.totalorder %s101, %s115
      %p117 = scmp.eq.s32.totalorder %s33, 0
      %p118 = por %p116, %p117
      %s120 = sadd.s32 %s119, 1
      %p123 = scmp.eq.s32.totalorder %s27, 3
      %p124 = scmp.ne.s32.totalorder %s119, %s121
      %p125 = scmp.eq.s32.totalorder %s27, 0
      %p126 = por %p124, %p125
      %p127 = scmp.ne.s32.totalorder %s119, %s121
      %p128 = scmp.eq.s32.totalorder %s32, 3
      %p129 = por %p127, %p128
      %p130 = scmp.ne.s32.totalorder %s121, %s122
      %p131 = scmp.eq.s32.totalorder %s32, 0
      %p132 = por %p130, %p131
      %p133 = scmp.ne.s32.totalorder %s121, %s122
      %p134 = scmp.eq.s32.totalorder %s33, 3
      %p135 = por %p133, %p134
      %p137 = scmp.ne.s32.totalorder %s122, %s136
      %p138 = scmp.eq.s32.totalorder %s33, 0
      %p139 = por %p137, %p138
      %s141 = sadd.s32 %s140, 1
      %p144 = scmp.eq.s32.totalorder %s27, 3
      %p145 = scmp.ne.s32.totalorder %s140, %s142
      %p146 = scmp.eq.s32.totalorder %s27, 0
      %p147 = por %p145, %p146
      %p148 = scmp.ne.s32.totalorder %s140, %s142
      %p149 = scmp.eq.s32.totalorder %s32, 3
      %p150 = por %p148, %p149
      %p151 = scmp.ne.s32.totalorder %s142, %s143
      %p152 = scmp.eq.s32.totalorder %s32, 0
      %p153 = por %p151, %p152
      %p154 = scmp.ne.s32.totalorder %s142, %s143
      %p155 = scmp.eq.s32.totalorder %s33, 3
      %p156 = por %p154, %p155
      %p158 = scmp.ne.s32.totalorder %s143, %s157
      %p159 = scmp.eq.s32.totalorder %s33, 0
      %p160 = por %p158, %p159
      %s162 = sadd.s32 %s161, 1
      %p165 = scmp.eq.s32.totalorder %s27, 3
      %p166 = scmp.ne.s32.totalorder %s161, %s163
      %p167 = scmp.eq.s32.totalorder %s27, 0
      %p168 = por %p166, %p167
      %p169 = scmp.ne.s32.totalorder %s161, %s163
      %p170 = scmp.eq.s32.totalorder %s32, 3
      %p171 = por %p169, %p170
      %p172 = scmp.ne.s32.totalorder %s163, %s164
      %p173 = scmp.eq.s32.totalorder %s32, 0
      %p174 = por %p172, %p173
      %p175 = scmp.ne.s32.totalorder %s163, %s164
      %p176 = scmp.eq.s32.totalorder %s33, 3
      %p177 = por %p175, %p176
      %p179 = scmp.ne.s32.totalorder %s164, %s178
      %p180 = scmp.eq.s32.totalorder %s33, 0
      %p181 = por %p179, %p180
      %s183 = sadd.s32 %s182, 1
      %p186 = scmp.eq.s32.totalorder %s27, 3
      %p187 = scmp.ne.s32.totalorder %s182, %s184
      %p188 = scmp.eq.s32.totalorder %s27, 0
      %p189 = por %p187, %p188
      %p190 = scmp.ne.s32.totalorder %s182, %s184
      %p191 = scmp.eq.s32.totalorder %s32, 3
      %p192 = por %p190, %p191
      %p193 = scmp.ne.s32.totalorder %s184, %s185
      %p194 = scmp.eq.s32.totalorder %s32, 0
      %p195 = por %p193, %p194
      %p196 = scmp.ne.s32.totalorder %s184, %s185
      %p197 = scmp.eq.s32.totalorder %s33, 3
      %p198 = por %p196, %p197
      %p200 = scmp.ne.s32.totalorder %s185, %s199
      %p201 = scmp.eq.s32.totalorder %s33, 0
      %p202 = por %p200, %p201
      %s204 = sadd.s32 %s203, 1
      %p207 = scmp.eq.s32.totalorder %s27, 3
      %p208 = scmp.ne.s32.totalorder %s203, %s205
      %p209 = scmp.eq.s32.totalorder %s27, 0
      %p210 = por %p208, %p209
      %p211 = scmp.ne.s32.totalorder %s203, %s205
      %p212 = scmp.eq.s32.totalorder %s32, 3
      %p213 = por %p211, %p212
      %p214 = scmp.ne.s32.totalorder %s205, %s206
      %p215 = scmp.eq.s32.totalorder %s32, 0
      %p216 = por %p214, %p215
      %p217 = scmp.ne.s32.totalorder %s205, %s206
      %p218 = scmp.eq.s32.totalorder %s33, 3
      %p219 = por %p217, %p218
      %p221 = scmp.ne.s32.totalorder %s206, %s220
      %p222 = scmp.eq.s32.totalorder %s33, 0
      %p223 = por %p221, %p222
      %s224 = ssub.s32 %s27, %s34
      %p225 = scmp.eq.s32.totalorder %s224, 0
      %s227 = sadd.s32 %s226, 1
      %s228 = scalar_select %p225, %s226, %s227
      %p231 = pneg %p225
      %p232 = scmp.eq.s32.totalorder %s27, 3
      %p233 = por %p231, %p232
      %p234 = scmp.ne.s32.totalorder %s226, %s229
      %p235 = scmp.eq.s32.totalorder %s27, 0
      %p236 = por %p234, %p235
      %p237 = scmp.ne.s32.totalorder %s226, %s229
      %p238 = scmp.eq.s32.totalorder %s32, 3
      %p239 = por %p237, %p238
      %p240 = scmp.ne.s32.totalorder %s229, %s230
      %p241 = scmp.eq.s32.totalorder %s32, 0
      %p242 = por %p240, %p241
      %p243 = scmp.ne.s32.totalorder %s229, %s230
      %p244 = scmp.eq.s32.totalorder %s33, 3
      %p245 = por %p243, %p244
      %p247 = scmp.ne.s32.totalorder %s230, %s246
      %p248 = scmp.eq.s32.totalorder %s33, 0
      %p249 = por %p247, %p248
      %p250 = scmp.le.s32.totalorder 1, %s27
      %p251 = scmp.lt.s32.totalorder %s27, 5
      %p252 = pnand %p250, %p251
      %p253 = pneg %p252
      // Predicated region
      $region9: #{tpu_custom_call.1} parent=5 // pred_check
        _
      $region10: #{tpu_custom_call.1} parent=5 // pred_check_branch
        %255 = sbr.rel (%p252) target = $region12
      $region11: #{tpu_custom_call.1} parent=5 // pred_region
        %s256 = ssub.s32 %s27, 1
        // Predicated region
        $region13: #{tpu_custom_call.1} parent=11 // pred_check
          %p257 = pneg %p48
        $region14: #{tpu_custom_call.1} parent=11 // pred_check_branch
          %259 = sbr.rel (%p257) target = $region16
        $region15: #{tpu_custom_call.1} parent=11 // pred_region
          _
        $region16: #{tpu_custom_call.1} parent=11 // pred_fallthru
          _
        // Predicated region
        $region17: #{tpu_custom_call.1} parent=11 // pred_check
          %p260 = pneg %p69
        $region18: #{tpu_custom_call.1} parent=11 // pred_check_branch
          %262 = sbr.rel (%p260) target = $region20
        $region19: #{tpu_custom_call.1} parent=11 // pred_region
          _
        $region20: #{tpu_custom_call.1} parent=11 // pred_fallthru
          _
        // Predicated region
        $region21: #{tpu_custom_call.1} parent=11 // pred_check
          %p263 = pneg %p90
        $region22: #{tpu_custom_call.1} parent=11 // pred_check_branch
          %265 = sbr.rel (%p263) target = $region24
        $region23: #{tpu_custom_call.1} parent=11 // pred_region
          _
        $region24: #{tpu_custom_call.1} parent=11 // pred_fallthru
          _
        // Predicated region
        $region25: #{tpu_custom_call.1} parent=11 // pred_check
          %p266 = pneg %p111
        $region26: #{tpu_custom_call.1} parent=11 // pred_check_branch
          %268 = sbr.rel (%p266) target = $region28
        $region27: #{tpu_custom_call.1} parent=11 // pred_region
          _
        $region28: #{tpu_custom_call.1} parent=11 // pred_fallthru
          _
        // Predicated region
        $region29: #{tpu_custom_call.1} parent=11 // pred_check
          %p269 = pneg %p132
        $region30: #{tpu_custom_call.1} parent=11 // pred_check_branch
          %271 = sbr.rel (%p269) target = $region32
        $region31: #{tpu_custom_call.1} parent=11 // pred_region
          _
        $region32: #{tpu_custom_call.1} parent=11 // pred_fallthru
          _
        // Predicated region
        $region33: #{tpu_custom_call.1} parent=11 // pred_check
          %p272 = pneg %p153
        $region34: #{tpu_custom_call.1} parent=11 // pred_check_branch
          %274 = sbr.rel (%p272) target = $region36
        $region35: #{tpu_custom_call.1} parent=11 // pred_region
          _
        $region36: #{tpu_custom_call.1} parent=11 // pred_fallthru
          _
        // Predicated region
        $region37: #{tpu_custom_call.1} parent=11 // pred_check
          %p275 = pneg %p174
        $region38: #{tpu_custom_call.1} parent=11 // pred_check_branch
          %277 = sbr.rel (%p275) target = $region40
        $region39: #{tpu_custom_call.1} parent=11 // pred_region
          _
        $region40: #{tpu_custom_call.1} parent=11 // pred_fallthru
          _
        // Predicated region
        $region41: #{tpu_custom_call.1} parent=11 // pred_check
          %p278 = pneg %p195
        $region42: #{tpu_custom_call.1} parent=11 // pred_check_branch
          %280 = sbr.rel (%p278) target = $region44
        $region43: #{tpu_custom_call.1} parent=11 // pred_region
          _
        $region44: #{tpu_custom_call.1} parent=11 // pred_fallthru
          _
        // Predicated region
        $region45: #{tpu_custom_call.1} parent=11 // pred_check
          %p281 = pneg %p216
        $region46: #{tpu_custom_call.1} parent=11 // pred_check_branch
          %283 = sbr.rel (%p281) target = $region48
        $region47: #{tpu_custom_call.1} parent=11 // pred_region
          _
        $region48: #{tpu_custom_call.1} parent=11 // pred_fallthru
          _
      $region12: #{tpu_custom_call.1} parent=5 // pred_fallthru
        _
      %p284 = scmp.lt.s32.totalorder %s27, 4
      // Predicated region
      $region49: #{tpu_custom_call.1} parent=5 // pred_check
        %p285 = pneg %p284
      $region50: #{tpu_custom_call.1} parent=5 // pred_check_branch
        %287 = sbr.rel (%p285) target = $region52
      $region51: #{tpu_custom_call.1} parent=5 // pred_region
        _
      $region52: #{tpu_custom_call.1} parent=5 // pred_fallthru
        _
      %p288 = scmp.le.s32.totalorder 1, %s27
      %p289 = scmp.lt.s32.totalorder %s27, 5
      %p290 = pnand %p288, %p289
      %p291 = pneg %p290
      // Predicated region
      $region53: #{tpu_custom_call.1} parent=5 // pred_check
        _
      $region54: #{tpu_custom_call.1} parent=5 // pred_check_branch
        %293 = sbr.rel (%p290) target = $region56
      $region55: #{tpu_custom_call.1} parent=5 // pred_region
        %s294 = ssub.s32 %s27, 1
        %p295 = pneg %p48
        %p296 = pneg %p45
        %p297 = pneg %p69
        %p298 = pneg %p66
        %p299 = pneg %p90
        %p300 = pneg %p87
        %p301 = pneg %p111
        %p302 = pneg %p108
        %p303 = pneg %p132
        %p304 = pneg %p129
        %p305 = pneg %p153
        %p306 = pneg %p150
        %p307 = pneg %p174
        %p308 = pneg %p171
        %p309 = pneg %p195
        %p310 = pneg %p192
        %p311 = pneg %p216
        %p312 = pneg %p213
        %p313 = pneg %p242
        %p314 = pneg %p239
        %s315 = sand.u32 %s229, 1
        %s316 = scalar_lea.sflag [#allocation6], %s315
        %s317 = sand.u32 %s229, 1
        %s318 = scalar_lea.vmem [#allocation5], %s317
        %p319 = scmp.eq.s32.totalorder %s32, 0
        // Predicated region
        $region57: #{tpu_custom_call.1} parent=55 // pred_check
          %p320 = pneg %p319
        $region58: #{tpu_custom_call.1} parent=55 // pred_check_branch
          %322 = sbr.rel (%p320) target = $region60
        $region59: #{tpu_custom_call.1} parent=55 // pred_region
          %v323 = vld [vmem:[%s2] sm:$0x1]
          %vm324 = vcmask 253952
          %325 = vst.msk [vmem:[#allocation2] sm:$0x1] %vm324, %v323
        $region60: #{tpu_custom_call.1} parent=55 // pred_fallthru
          _
        %v326 = vld [vmem:[#allocation2] sm:$0x1]
        %s327 = sld [smem:[#allocation4 + %s32]]
        %v328 = vld [vmem:[%s1] sm:$0xff]
        %v329 = vld [vmem:[%s1 + $0x8] sm:$0xff]
        %v330 = vlaneseq
        %v331 = vshrl.u32 %v330, 7
        %v332 = vadd.s32 %v331, 8
        %v333 = vstv %s327
        %vm334 = vcmp.eq.s32.totalorder %v331, %v333
        %vm335 = vcmp.eq.s32.totalorder %v332, %v333
        %v336 = vsel %vm334, %v328, 0.0
        %v337 = vsel %vm335, %v329, 0.0
        %vm338 = vcmask 261120
        %v339 = vsel %vm338, %v336, 0.0
        %v340 = vsel %vm338, %v337, 0.0
        %v341 = vadd.f32 %v339, %v340
        %v342 = vrot.slane %v341, 4
        %v343 = vadd.f32 %v341, %v342
        %v344 = vrot.slane %v343, 2
        %v345 = vadd.f32 %v343, %v344
        %v346 = vrot.slane %v345, 1
        %v347 = vadd.f32 %v345, %v346
        %v349 = vperm.slane %v326, 0
        %350 = vrot.lane.b32.xlu0 %v349, 32
        %v351 = vpop.permute.xlu0 %350
        %v353 = vsel %vm338, %v347, %v351
        %v354 = vld [vmem:[%s9] sm:$0x1]
        %v355 = vld [vmem:[%s4] sm:$0xff]
        %v356 = vld [vmem:[%s4 + $0x8] sm:$0xff]
        %v357 = vld [vmem:[%s4 + $0x10] sm:$0xff]
        %v358 = vld [vmem:[%s4 + $0x18] sm:$0xff]
        %v359 = vld [vmem:[%s4 + $0x20] sm:$0xff]
        %v360 = vld [vmem:[%s4 + $0x28] sm:$0xff]
        %v361 = vld [vmem:[%s4 + $0x30] sm:$0xff]
        %v362 = vld [vmem:[%s4 + $0x38] sm:$0xff]
        %vm363 = vcmask 523264
        %v365 = vsel %vm363, %v353, 0
        %367 = vmatpush.msra.mxu0 0.0
        %368 = vmatpush.msra.mxu0 0.0
        %369 = vmatpush.msra.mxu0 0.0
        %370 = vmatpush.msra.mxu0 0.0
        %371 = vmatpush.msra.mxu0 0.0
        %372 = vmatpush.msra.mxu0 0.0
        %373 = vmatpush.msra.mxu0 0.0
        %374 = vmatpush.msra.mxu0 0.0
        %375 = vmatpush.msra.mxu0 %v362
        %376 = vmatpush.msra.mxu0 %v361
        %377 = vmatpush.msra.mxu0 %v360
        %378 = vmatpush.msra.mxu0 %v359
        %379 = vmatpush.msra.mxu0 %v358
        %380 = vmatpush.msra.mxu0 %v357
        %381 = vmatpush.msra.mxu0 %v356
        %382 = vmatpush.msra.mxu0 %v355
        %383 = vmatmul.f32.gmra.mxu0 %v365
        %v384 = vpop.f32.mrf.mxu0
        %v385 = vadd.f32 %v354, %v384
        %386 = vdwg.mxu0
        %vm387 = vcmask 57344
        %v388 = vsel %vm387, %v385, -inf
        %389 = vmax.xlane.f32.xlu0 %v388
        %v390 = vpop.xlane.xlu0 %389
        %v391 = vsub.f32 %v385, %v390
        %v392 = vmul.f32 %v391, 1.442695
        %v393 = vpow.pop %v392
        %v394 = vsel %vm387, %v393, 0.0
        %395 = vadd.xlane.f32.xlu0 %v394
        %v396 = vpop.xlane.xlu0 %395
        %v397 = vrcp.pop %v396
        %v398 = vmul.f32 %v396, %v397
        %v399 = vsub.f32 1.0, %v398
        %v400 = vmul.f32 %v397, %v399
        %v401 = vadd.f32 %v397, %v400
        %vm402 = vweird.f32 %v396
        %vm403 = vweird.f32 %v397
        %vm404 = vmor %vm402, %vm403
        %v405 = vsel %vm404, %v397, %v401
        %v406 = vand.u32 2147483647, %v396
        %vm407 = vcmp.eq.f32.partialorder %v406, 8.507059e+37
        %v408 = vand.u32 %v396, 2147483648
        %v409 = vor.u32 1.1754944e-38, %v408
        %v410 = vsel %vm407, %v409, %v405
        %v411 = vmul.f32 %v393, %v410
        %v412 = vld [vmem:[%s3] sm:$0xff]
        %vm413 = vcmask 64512
        %v415 = vsel %vm413, %v411, 0
        %417 = vmatpush.msra.mxu0 0.0
        %418 = vmatpush.msra.mxu0 0.0
        %419 = vmatpush.msra.mxu0 0.0
        %420 = vmatpush.msra.mxu0 0.0
        %421 = vmatpush.msra.mxu0 0.0
        %422 = vmatpush.msra.mxu0 0.0
        %423 = vmatpush.msra.mxu0 0.0
        %424 = vmatpush.msra.mxu0 0.0
        %425 = vmatpush.msra.mxu0 0.0
        %426 = vmatpush.msra.mxu0 0.0
        %427 = vmatpush.msra.mxu0 0.0
        %428 = vmatpush.msra.mxu0 0.0
        %429 = vmatpush.msra.mxu0 0.0
        %430 = vmatpush.msra.mxu0 0.0
        %431 = vmatpush.msra.mxu0 0.0
        %432 = vmatpush.msra.mxu0 %v412
        %433 = vmatmul.f32.gmra.mxu0 %v415
        %v434 = vpop.f32.mrf.mxu0
        %v435 = vadd.f32 0.0, %v434
        %436 = vdwg.mxu0
        %438 = vrot.lane.b32.xlu0 %v435, 32
        %v439 = vpop.permute.xlu0 %438
        %v441 = vsel %vm338, %v347, %v439
        %v442 = vld [vmem:[%s9 + $0x1] sm:$0x1]
        %v443 = vld [vmem:[%s5] sm:$0xff]
        %v444 = vld [vmem:[%s5 + $0x8] sm:$0xff]
        %v445 = vld [vmem:[%s5 + $0x10] sm:$0xff]
        %v446 = vld [vmem:[%s5 + $0x18] sm:$0xff]
        %v447 = vld [vmem:[%s5 + $0x20] sm:$0xff]
        %v448 = vld [vmem:[%s5 + $0x28] sm:$0xff]
        %v449 = vld [vmem:[%s5 + $0x30] sm:$0xff]
        %v450 = vld [vmem:[%s5 + $0x38] sm:$0xff]
        %v452 = vsel %vm363, %v441, 0
        %454 = vmatpush.msra.mxu0 0.0
        %455 = vmatpush.msra.mxu0 0.0
        %456 = vmatpush.msra.mxu0 0.0
        %457 = vmatpush.msra.mxu0 0.0
        %458 = vmatpush.msra.mxu0 0.0
        %459 = vmatpush.msra.mxu0 0.0
        %460 = vmatpush.msra.mxu0 0.0
        %461 = vmatpush.msra.mxu0 0.0
        %462 = vmatpush.msra.mxu0 %v450
        %463 = vmatpush.msra.mxu0 %v449
        %464 = vmatpush.msra.mxu0 %v448
        %465 = vmatpush.msra.mxu0 %v447
        %466 = vmatpush.msra.mxu0 %v446
        %467 = vmatpush.msra.mxu0 %v445
        %468 = vmatpush.msra.mxu0 %v444
        %469 = vmatpush.msra.mxu0 %v443
        %470 = vmatmul.f32.gmra.mxu0 %v452
        %v471 = vpop.f32.mrf.mxu0
        %v472 = vadd.f32 %v442, %v471
        %473 = vdwg.mxu0
        %v474 = vmax.f32 %v472, 0.0
        %v475 = vld [vmem:[%s9 + $0x2] sm:$0x1]
        %v476 = vld [vmem:[%s9 + $0x3] sm:$0x1]
        %v477 = vld [vmem:[%s6] sm:$0xff]
        %v478 = vld [vmem:[%s6 + $0x8] sm:$0xff]
        %v479 = vld [vmem:[%s6 + $0x10] sm:$0xff]
        %v480 = vld [vmem:[%s6 + $0x18] sm:$0xff]
        %v482 = vsel %vm338, %v474, 0
        %484 = vmatpush.msra.mxu0 0.0
        %485 = vmatpush.msra.mxu0 0.0
        %486 = vmatpush.msra.mxu0 0.0
        %487 = vmatpush.msra.mxu0 0.0
        %488 = vmatpush.msra.mxu0 0.0
        %489 = vmatpush.msra.mxu0 0.0
        %490 = vmatpush.msra.mxu0 0.0
        %491 = vmatpush.msra.mxu0 0.0
        %492 = vmatpush.msra.mxu0 0.0
        %493 = vmatpush.msra.mxu0 0.0
        %494 = vmatpush.msra.mxu0 0.0
        %495 = vmatpush.msra.mxu0 0.0
        %496 = vmatpush.msra.mxu0 %v480
        %497 = vmatpush.msra.mxu0 %v479
        %498 = vmatpush.msra.mxu0 %v478
        %499 = vmatpush.msra.mxu0 %v477
        %500 = vmatmul.f32.gmra.mxu0 %v482
        %v501 = vpop.f32.mrf.mxu0
        %v502 = vadd.f32 %v475, %v501
        %503 = vdwg.mxu0
        %v504 = vld [vmem:[%s7] sm:$0xff]
        %v505 = vld [vmem:[%s7 + $0x8] sm:$0xff]
        %v506 = vld [vmem:[%s7 + $0x10] sm:$0xff]
        %v507 = vld [vmem:[%s7 + $0x18] sm:$0xff]
        %v508 = vsel %vm338, %v326, 0
        %510 = vmatpush.msra.mxu0 0.0
        %511 = vmatpush.msra.mxu0 0.0
        %512 = vmatpush.msra.mxu0 0.0
        %513 = vmatpush.msra.mxu0 0.0
        %514 = vmatpush.msra.mxu0 0.0
        %515 = vmatpush.msra.mxu0 0.0
        %516 = vmatpush.msra.mxu0 0.0
        %517 = vmatpush.msra.mxu0 0.0
        %518 = vmatpush.msra.mxu0 0.0
        %519 = vmatpush.msra.mxu0 0.0
        %520 = vmatpush.msra.mxu0 0.0
        %521 = vmatpush.msra.mxu0 0.0
        %522 = vmatpush.msra.mxu0 %v507
        %523 = vmatpush.msra.mxu0 %v506
        %524 = vmatpush.msra.mxu0 %v505
        %525 = vmatpush.msra.mxu0 %v504
        %526 = vmatmul.f32.gmra.mxu0 %v508
        %v527 = vpop.f32.mrf.mxu0
        %v528 = vadd.f32 %v476, %v527
        %529 = vdwg.mxu0
        %v530 = vadd.f32 %v502, %v528
        %v531 = vxor.u32 %v530, 2147483648
        %v532 = vmul.f32 %v531, 1.442695
        %v533 = vpow.pop %v532
        %v534 = vadd.f32 %v533, 1.0
        %v535 = vrcp.pop %v534
        %v536 = vmul.f32 %v534, %v535
        %v537 = vsub.f32 1.0, %v536
        %v538 = vmul.f32 %v535, %v537
        %v539 = vadd.f32 %v535, %v538
        %vm540 = vweird.f32 %v534
        %vm541 = vweird.f32 %v535
        %vm542 = vmor %vm540, %vm541
        %v543 = vsel %vm542, %v535, %v539
        %v544 = vand.u32 2147483647, %v534
        %vm545 = vcmp.eq.f32.partialorder %v544, 8.507059e+37
        %v546 = vand.u32 %v534, 2147483648
        %v547 = vor.u32 1.1754944e-38, %v546
        %v548 = vsel %vm545, %v547, %v543
        %v549 = vmul.f32 1.0, %v548
        %551 = vrot.lane.b32.xlu0 %v528, 64
        %v552 = vpop.permute.xlu0 %551
        %v554 = vmul.f32 %v549, %v552
        %556 = vrot.lane.b32.xlu0 %v554, 64
        %v557 = vpop.permute.xlu0 %556
        %v559 = vadd.f32 %v502, %v557
        %v560 = vtanh.pop %v559
        %v561 = vsub.f32 1.0, %v549
        %563 = vrot.lane.b32.xlu0 %v560, 96
        %v564 = vpop.permute.xlu0 %563
        %v566 = vmul.f32 %v561, %v564
        %v567 = vmul.f32 %v549, %v351
        %v568 = vadd.f32 %v566, %v567
        %570 = vrot.lane.b32.xlu0 %v568, 96
        %v571 = vpop.permute.xlu0 %570
        %vm573 = vcmask 253952
        %574 = vst.msk [vmem:[#allocation2] sm:$0x1] %vm573, %v571
        %v575 = vld [vmem:[%s9 + $0x4] sm:$0x1]
        %v576 = vld [vmem:[%s8] sm:$0xff]
        %v577 = vld [vmem:[%s8 + $0x8] sm:$0xff]
        %v578 = vld [vmem:[%s8 + $0x10] sm:$0xff]
        %v579 = vld [vmem:[%s8 + $0x18] sm:$0xff]
        %v580 = vsel %vm338, %v571, 0
        %582 = vmatpush.msra.mxu0 0.0
        %583 = vmatpush.msra.mxu0 0.0
        %584 = vmatpush.msra.mxu0 0.0
        %585 = vmatpush.msra.mxu0 0.0
        %586 = vmatpush.msra.mxu0 0.0
        %587 = vmatpush.msra.mxu0 0.0
        %588 = vmatpush.msra.mxu0 0.0
        %589 = vmatpush.msra.mxu0 0.0
        %590 = vmatpush.msra.mxu0 0.0
        %591 = vmatpush.msra.mxu0 0.0
        %592 = vmatpush.msra.mxu0 0.0
        %593 = vmatpush.msra.mxu0 0.0
        %594 = vmatpush.msra.mxu0 %v579
        %595 = vmatpush.msra.mxu0 %v578
        %596 = vmatpush.msra.mxu0 %v577
        %597 = vmatpush.msra.mxu0 %v576
        %598 = vmatmul.f32.gmra.mxu0 %v580
        %v599 = vpop.f32.mrf.mxu0
        %v600 = vadd.f32 %v575, %v599
        %601 = vdwg.mxu0
        %vm602 = vcmask 122880
        %v603 = vsel %vm602, %v600, -inf
        %604 = vmax.xlane.f32.xlu0 %v603
        %v605 = vpop.xlane.xlu0 %604
        %v606 = vsub.f32 %v600, %v605
        %v607 = vmul.f32 %v606, 1.442695
        %v608 = vpow.pop %v607
        %v609 = vsel %vm602, %v608, 0.0
        %610 = vadd.xlane.f32.xlu0 %v609
        %v611 = vpop.xlane.xlu0 %610
        %v612 = vlog2.pop %v611
        %v613 = vmul.f32 %v612, 0.6931472
        %v614 = vadd.f32 %v613, %v605
        %v615 = vsub.f32 %v600, %v614
        %616 = vrot.lane.b32.xlu0 %v568, 112
        %v617 = vpop.permute.xlu0 %616
        %619 = vrot.lane.b32.xlu0 %v411, 48
        %v620 = vpop.permute.xlu0 %619
        %vm622 = vcmask 130048
        %v623 = vsel %vm622, %v615, %v617
        %vm624 = vcmask 392192
        %v625 = vsel %vm624, %v623, %v620
        %vm626 = vcmask 457728
        %v627 = vsel %vm626, %v625, 0.0
        %628 = vst [vmem:[%s318] sm:$0x1] %v627
        %s629 = sand.u32 %s229, 1
        %s630 = scalar_lea.sflag [#allocation6], %s629
        %s631 = sand.u32 %s229, 1
        %s632 = scalar_lea.vmem [#allocation5], %s631
        // Predicated region
        $region61: #{tpu_custom_call.1} parent=55 // pred_check
          %p633 = pneg %p239
        $region62: #{tpu_custom_call.1} parent=55 // pred_check_branch
          %635 = sbr.rel (%p633) target = $region64
        $region63: #{tpu_custom_call.1} parent=55 // pred_region
          %637 = vsyncadd %s630, 0
          %s638 = scalar_lea.hbm %s10, %s32
          %s640 = sshll.u32 %s632, 4
          %s641 = int_to_ptr.vmem [resolvable:$true] %s640
          %s642 = sshll.u32 %s638, 4
          %s643 = int_to_ptr.hbm [resolvable:$true] %s642
          %645 = dma.vmem_to_hbm [thread:$0]  %s641, 16, %s643, %s630
        $region64: #{tpu_custom_call.1} parent=55 // pred_fallthru
          _
      $region56: #{tpu_custom_call.1} parent=5 // pred_fallthru
        _
      %p646 = scmp.le.s32.totalorder 2, %s27
      // Predicated region
      $region65: #{tpu_custom_call.1} parent=5 // pred_check
        %p647 = pneg %p646
      $region66: #{tpu_custom_call.1} parent=5 // pred_check_branch
        %649 = sbr.rel (%p647) target = $region68
      $region67: #{tpu_custom_call.1} parent=5 // pred_region
        %s650 = ssub.s32 %s27, 2
        // Predicated region
        $region69: #{tpu_custom_call.1} parent=67 // pred_check
          %p651 = pneg %p245
        $region70: #{tpu_custom_call.1} parent=67 // pred_check_branch
          %653 = sbr.rel (%p651) target = $region72
        $region71: #{tpu_custom_call.1} parent=67 // pred_region
          %s654 = sand.u32 %s230, 1
          %s655 = scalar_lea.sflag [#allocation6], %s654
          %s656 = sand.u32 %s230, 1
          %s657 = scalar_lea.vmem [#allocation5], %s656
          %659 = dma.done %s655, 16
        $region72: #{tpu_custom_call.1} parent=67 // pred_fallthru
          _
      $region68: #{tpu_custom_call.1} parent=5 // pred_fallthru
        _
    $region6: #{tpu_custom_call.1} parent=1 // loop_footer
      %s31 = sadd.s32 1, %s27
    $region7: #{tpu_custom_call.1} parent=1 // loop_footer_branch
      %26 = sbr.rel target = $region3
    $region8: #{tpu_custom_call.1} parent=1 // loop_exit
      _
    %660 = vsyncpa [#allocation6], 1
    %s661 = scalar_lea.sflag [#allocation6], 1
    %662 = vsyncpa %s661, 1

</llo_original>
